<compile_context>
chip_gen: v7x
topology: tpu7x:2x2x1
jax: 0.10.0
libtpu: 0.0.40
codegen_flags: <defaults>
</compile_context>

<pallas_src>
import functools

import numpy as np
import jax
import jax.numpy as jnp
from jax.experimental import pallas as pl
from jax.experimental.pallas import tpu as pltpu

_EPSILON = 1e-4  # matches ProtoPool.epsilon


def _round_up(x, m):
    return ((x + m - 1) // m) * m


def _protopool_kernel(f_ref, w_ref, b_ref, pT_ref, p2_ref, pp_ref, sel_ref,
                      min_ref, logits_ref, min_sc, avg_sc, *, hw, bb):
    """One batch block of the post-backbone ProtoPool forward.

    f_ref     : (bb*hw, Cf)     backbone features, channels-last, bb images stacked
    w_ref     : (Cf, D)         add-on 1x1 conv weight (compute dtype)
    b_ref     : (1, D)          add-on conv bias (f32)
    pT_ref    : (D, Ppad)       prototype vectors, transposed, zero padded
    p2_ref    : (1, Ppad)       per-prototype squared norms, zero padded (f32)
    pp_ref    : (Ppad, Mpad)    softmaxed proto_presence, (P, 2C*Nd) zero padded (f32)
    sel_ref   : (Mpad, Cpad)    descriptor -> class summation matrix (f32)
    min_ref   : (1, bb, Ppad)   min distances output
    logits_ref: (1, bb, Cpad)   logits output
    min_sc, avg_sc : (bb, Ppad) VMEM scratch
    """
    cdt = w_ref.dtype

    # add-on 1x1 conv + sigmoid    (MXU: M = bb*hw, K = Cf, N = D)
    f = f_ref[...]
    z = jax.nn.sigmoid(
        jnp.dot(f.astype(cdt), w_ref[...], preferred_element_type=jnp.float32)
        + b_ref[...])                                            # (bb*hw, D) f32

    # l2 "convolution" against prototypes   (MXU: M = bb*hw, K = D, N = Ppad)
    x2 = jnp.sum(z * z, axis=-1, keepdims=True)                  # (bb*hw, 1) f32
    xp = jnp.dot(z.astype(cdt), pT_ref[...],
                 preferred_element_type=jnp.float32)             # (bb*hw, Ppad)
    dist = jnp.maximum(x2 - 2.0 * xp + p2_ref[...], 0.0)         # (bb*hw, Ppad)

    # spatial min / avg pooling per image in the block (static unroll, bb small)
    for b in range(bb):
        d_b = dist[b * hw:(b + 1) * hw, :]                       # (hw, Ppad)
        min_sc[b, :] = jnp.min(d_b, axis=0)
        avg_sc[b, :] = jnp.mean(d_b, axis=0)
    min_b = min_sc[...]                                          # (bb, Ppad)
    avg_b = avg_sc[...]

    # mix with proto_presence, distance -> similarity, sum descriptors per class
    pp = pp_ref[...]
    mm = jnp.dot(min_b, pp, preferred_element_type=jnp.float32)  # (bb, Mpad)
    ma = jnp.dot(avg_b, pp, preferred_element_type=jnp.float32)
    sim = (jnp.log((mm + 1.0) / (mm + _EPSILON))
           - jnp.log((ma + 1.0) / (ma + _EPSILON)))
    logits_b = jnp.dot(sim, sel_ref[...],
                       preferred_element_type=jnp.float32)       # (bb, Cpad)

    min_ref[...] = min_b[None, :, :]
    logits_ref[...] = logits_b[None, :, :]


def protopool_forward(feats_nchw, w_add, b_add, prototypes, proto_presence,
                      compute_dtype=jnp.float32):
    """feats_nchw: (B, Cf, H, W) backbone feature map (NCHW, as in PyTorch).

    Returns (logits, min_distances, proto_presence_softmax), matching
    ProtoPool.forward(x, gumbel_scale=0) with use_last_layer=False.
    """
    B, Cf, H, W = feats_nchw.shape
    P, D = prototypes.shape
    C2, _, Nd = proto_presence.shape
    HW = H * W
    M = C2 * Nd

    # lane-dense padded extents (128 lanes)
    Ppad = _round_up(P, 128)
    Mpad = _round_up(M, 128)
    Cpad = _round_up(C2, 128)

    # Batch blocking: target >= 128 MXU rows per grid step.  With B large enough
    # this also yields a >=2-long "parallel" grid axis (keeps both v7x TCs busy).
    Bb = min(B, max(1, -(-128 // HW)))
    nb = -(-B // Bb)
    if nb > 1 and (Bb * HW) % 8 != 0:
        Bb, nb = B, 1            # keep blocks (8,128)-legal: one full-batch block
    Bp = nb * Bb

    # ---- glue: layout + padded parameters (tiny, O(params)) -----------------
    # TODO(synk): with a channels-last backbone this transpose disappears.
    f = jnp.transpose(feats_nchw, (0, 2, 3, 1)).reshape(B * HW, Cf)
    f = f.astype(compute_dtype)
    if Bp != B:
        f = jnp.pad(f, ((0, (Bp - B) * HW), (0, 0)))

    w = w_add.astype(compute_dtype)                                   # (Cf, D)
    bias = b_add.reshape(1, D).astype(jnp.float32)
    pT = jnp.zeros((D, Ppad), compute_dtype).at[:, :P].set(
        prototypes.T.astype(compute_dtype))
    p2 = jnp.zeros((1, Ppad), jnp.float32).at[:, :P].set(
        jnp.sum(prototypes.astype(jnp.float32) ** 2, axis=1))

    # softmax over the prototype axis (module output; also consumed by the kernel)
    pp_soft = jax.nn.softmax(proto_presence.astype(jnp.float32), axis=1)  # (2C,P,Nd)
    pp_mat = jnp.transpose(pp_soft, (1, 0, 2)).reshape(P, M)
    pp_pad = jnp.zeros((Ppad, Mpad), jnp.float32).at[:P, :M].set(pp_mat)

    # descriptor -> class summation matrix, built with numpy at trace time
    sel_np = np.zeros((Mpad, Cpad), np.float32)
    sel_np[np.arange(M), np.arange(M) // Nd] = 1.0
    sel = jnp.asarray(sel_np)

    # rough per-step VMEM footprint -> explicit limit (v7x has 64 MiB physical)
    per_step_bytes = 4 * (
        2 * Bb * HW * Cf                    # double-buffered feature block
        + Cf * D + D + D * Ppad + Ppad      # resident add-on weight + prototypes
        + Ppad * Mpad + Mpad * Cpad         # proto-presence + class-sum matrices
        + Bb * HW * (D + 2 * Ppad)          # z / xp / dist live intermediates
        + 4 * Bb * (Ppad + Cpad)            # double-buffered outputs
        + 2 * Bb * Ppad)                    # scratch
    vmem_limit = int(min(max(2 * per_step_bytes, 8 << 20), 48 << 20))

    kernel = functools.partial(_protopool_kernel, hw=HW, bb=Bb)

    def _full(shape):
        return pl.BlockSpec(shape, lambda i, _s=len(shape): (0,) * _s)

    min_pad, logits_pad = pl.pallas_call(
        kernel,
        out_shape=(jax.ShapeDtypeStruct((nb, Bb, Ppad), jnp.float32),
                   jax.ShapeDtypeStruct((nb, Bb, Cpad), jnp.float32)),
        grid_spec=pltpu.PrefetchScalarGridSpec(
            num_scalar_prefetch=0,
            grid=(nb,),
            in_specs=[
                pl.BlockSpec((Bb * HW, Cf), lambda i: (i, 0)),
                _full((Cf, D)),
                _full((1, D)),
                _full((D, Ppad)),
                _full((1, Ppad)),
                _full((Ppad, Mpad)),
                _full((Mpad, Cpad)),
            ],
            out_specs=(pl.BlockSpec((1, Bb, Ppad), lambda i: (i, 0, 0)),
                       pl.BlockSpec((1, Bb, Cpad), lambda i: (i, 0, 0))),
            scratch_shapes=[pltpu.VMEM((Bb, Ppad), jnp.float32),
                            pltpu.VMEM((Bb, Ppad), jnp.float32)],
        ),
        compiler_params=pltpu.CompilerParams(
            dimension_semantics=("parallel",),
            vmem_limit_bytes=vmem_limit),
    )(f, w, bias, pT, p2, pp_pad, sel)

    min_d = min_pad.reshape(Bp, Ppad)[:B, :P]
    logits = logits_pad.reshape(Bp, Cpad)[:B, :C2]
    return logits, min_d, pp_soft


def _reference_forward(feats_nchw, w_add, b_add, prototypes, proto_presence):
    """Pure-JAX reference mirroring the PyTorch forward (gumbel_scale=0)."""
    B, Cf, H, W = feats_nchw.shape
    P, D = prototypes.shape
    eps = 1e-4
    f = jnp.transpose(feats_nchw, (0, 2, 3, 1)).reshape(B, H * W, Cf)
    z = jax.nn.sigmoid(f @ w_add + b_add[None, None, :])                 # add-on 1x1 conv
    x2sum = jnp.sum(z * z, axis=-1, keepdims=True)
    xp = z @ prototypes.T
    p2 = jnp.sum(prototypes * prototypes, axis=1)[None, None, :]
    dist = jnp.maximum(x2sum - 2.0 * xp + p2, 0.0)                       # (B, HW, P)
    min_d = jnp.min(dist, axis=1)
    avg_d = jnp.mean(dist, axis=1)
    pp = jax.nn.softmax(proto_presence, axis=1)                          # (2C, P, Nd)
    mixed_min = jnp.einsum('bp,cpn->bcn', min_d, pp)
    mixed_avg = jnp.einsum('bp,cpn->bcn', avg_d, pp)
    sim_min = jnp.log((mixed_min + 1.0) / (mixed_min + eps))
    sim_avg = jnp.log((mixed_avg + 1.0) / (mixed_avg + eps))
    logits = jnp.sum(sim_min - sim_avg, axis=-1)
    return logits, min_d, pp


if __name__ == "__main__":
    # Small, module-consistent shapes:
    #   backbone feature map: (B=2, Cf=32, H=8, W=8)  (stand-in for resnet34 output)
    #   num_prototypes P=16, proto_depth D=128, num_descriptive Nd=6, num_classes C=3
    B, Cf, H, W = 2, 32, 8, 8
    P, D, Nd, C = 16, 128, 6, 3

    key = jax.random.PRNGKey(0)
    k1, k2, k3, k4 = jax.random.split(key, 4)

    x = jax.random.normal(k1, (B, Cf, H, W), dtype=jnp.float32)

    # Deterministic parameter init (mirrors __init__ shapes):
    w_add = jax.random.normal(k2, (Cf, D), dtype=jnp.float32) * np.float32(np.sqrt(2.0 / D))
    b_add = jnp.zeros((D,), dtype=jnp.float32)
    prototypes = jax.random.uniform(k3, (P, D), dtype=jnp.float32)
    proto_presence = jax.random.normal(k4, (2 * C, P, Nd), dtype=jnp.float32) * np.float32(
        np.sqrt(2.0 / (P + Nd)))

    logits, min_distances, pp_soft = protopool_forward(
        x, w_add, b_add, prototypes, proto_presence)
    jax.block_until_ready((logits, min_distances, pp_soft))

    ref_logits, ref_min, ref_pp = _reference_forward(
        x, w_add, b_add, prototypes, proto_presence)

    assert logits.shape == (B, 2 * C)
    assert min_distances.shape == (B, P)
    assert pp_soft.shape == (2 * C, P, Nd)
    np.testing.assert_allclose(np.asarray(logits), np.asarray(ref_logits),
                               rtol=1e-3, atol=1e-3)
    np.testing.assert_allclose(np.asarray(min_distances), np.asarray(ref_min),
                               rtol=1e-3, atol=1e-3)
    np.testing.assert_allclose(np.asarray(pp_soft), np.asarray(ref_pp),
                               rtol=1e-3, atol=1e-3)

    print("KERNEL_OK")
</pallas_src>

<mosaic_0001>
module attributes {stable_mosaic.version = 11 : i64} {
  func.func @_protopool_kernel(%arg0: i32, %arg1: memref<128x32xf32, #tpu.memory_space<vmem>>, %arg2: memref<32x128xf32, #tpu.memory_space<vmem>>, %arg3: memref<1x128xf32, #tpu.memory_space<vmem>>, %arg4: memref<128x128xf32, #tpu.memory_space<vmem>>, %arg5: memref<1x128xf32, #tpu.memory_space<vmem>>, %arg6: memref<128x128xf32, #tpu.memory_space<vmem>>, %arg7: memref<128x128xf32, #tpu.memory_space<vmem>>, %arg8: memref<1x2x128xf32, #tpu.memory_space<vmem>>, %arg9: memref<1x2x128xf32, #tpu.memory_space<vmem>>, %arg10: memref<2x128xf32, #tpu.memory_space<vmem>>, %arg11: memref<2x128xf32, #tpu.memory_space<vmem>>) attributes {dimension_semantics = [#tpu.dimension_semantics<parallel>], iteration_bounds = array<i64: 1>, scalar_prefetch = 0 : i64, scratch_operands = 2 : i64, tpu.core_type = #tpu.core_type<tc>, window_params = [{transform_indices = @transform_0, window_bounds = array<i64: 128, 32>}, {pipeline_mode = #tpu.pipeline_mode<synchronous>, transform_indices = @transform_1, window_bounds = array<i64: 32, 128>}, {pipeline_mode = #tpu.pipeline_mode<synchronous>, transform_indices = @transform_2, window_bounds = array<i64: 1, 128>}, {pipeline_mode = #tpu.pipeline_mode<synchronous>, transform_indices = @transform_3, window_bounds = array<i64: 128, 128>}, {pipeline_mode = #tpu.pipeline_mode<synchronous>, transform_indices = @transform_4, window_bounds = array<i64: 1, 128>}, {pipeline_mode = #tpu.pipeline_mode<synchronous>, transform_indices = @transform_5, window_bounds = array<i64: 128, 128>}, {pipeline_mode = #tpu.pipeline_mode<synchronous>, transform_indices = @transform_6, window_bounds = array<i64: 128, 128>}, {transform_indices = @transform_7, window_bounds = array<i64: 1, 2, 128>}, {transform_indices = @transform_8, window_bounds = array<i64: 1, 2, 128>}]} {
    %c0 = arith.constant 0 : index
    %c0_0 = arith.constant 0 : index
    %0 = vector.load %arg1[%c0, %c0_0] : memref<128x32xf32, #tpu.memory_space<vmem>>, vector<128x32xf32>
    %c0_1 = arith.constant 0 : index
    %c0_2 = arith.constant 0 : index
    %1 = vector.load %arg2[%c0_1, %c0_2] : memref<32x128xf32, #tpu.memory_space<vmem>>, vector<32x128xf32>
    %cst = arith.constant dense<0.000000e+00> : vector<128x128xf32>
    %2 = tpu.matmul %0, %1, %cst {dimension_numbers = #tpu.dot_dimension_numbers<[1], [0], [0], [1], [0, 0, 1, 1], [], []>} : vector<128x32xf32>, vector<32x128xf32>, vector<128x128xf32> -> vector<128x128xf32>
    %c0_3 = arith.constant 0 : index
    %c0_4 = arith.constant 0 : index
    %3 = vector.load %arg3[%c0_3, %c0_4] : memref<1x128xf32, #tpu.memory_space<vmem>>, vector<1x128xf32>
    %4 = vector.broadcast %3 : vector<1x128xf32> to vector<128x128xf32>
    %5 = arith.addf %2, %4 : vector<128x128xf32>
    %6 = arith.negf %5 : vector<128x128xf32>
    %7 = math.exp %6 : vector<128x128xf32>
    %cst_5 = arith.constant 1.000000e+00 : f32
    %8 = vector.broadcast %cst_5 : f32 to vector<128x128xf32>
    %9 = arith.addf %8, %7 : vector<128x128xf32>
    %10 = arith.divf %8, %9 : vector<128x128xf32>
    %11 = arith.mulf %10, %10 : vector<128x128xf32>
    %cst_6 = arith.constant dense<0.000000e+00> : vector<128xf32>
    %12 = vector.multi_reduction <add>, %11, %cst_6 [1] : vector<128x128xf32> to vector<128xf32>
    %13 = vector.shape_cast %12 : vector<128xf32> to vector<128x1xf32>
    %c0_7 = arith.constant 0 : index
    %c0_8 = arith.constant 0 : index
    %14 = vector.load %arg4[%c0_7, %c0_8] : memref<128x128xf32, #tpu.memory_space<vmem>>, vector<128x128xf32>
    %cst_9 = arith.constant dense<0.000000e+00> : vector<128x128xf32>
    %15 = tpu.matmul %10, %14, %cst_9 {dimension_numbers = #tpu.dot_dimension_numbers<[1], [0], [0], [1], [0, 0, 1, 1], [], []>} : vector<128x128xf32>, vector<128x128xf32>, vector<128x128xf32> -> vector<128x128xf32>
    %cst_10 = arith.constant 2.000000e+00 : f32
    %16 = vector.broadcast %cst_10 : f32 to vector<128x128xf32>
    %17 = arith.mulf %16, %15 : vector<128x128xf32>
    %18 = vector.broadcast %13 : vector<128x1xf32> to vector<128x128xf32>
    %19 = arith.subf %18, %17 : vector<128x128xf32>
    %c0_11 = arith.constant 0 : index
    %c0_12 = arith.constant 0 : index
    %20 = vector.load %arg5[%c0_11, %c0_12] : memref<1x128xf32, #tpu.memory_space<vmem>>, vector<1x128xf32>
    %21 = vector.broadcast %20 : vector<1x128xf32> to vector<128x128xf32>
    %22 = arith.addf %19, %21 : vector<128x128xf32>
    %cst_13 = arith.constant 0.000000e+00 : f32
    %23 = vector.broadcast %cst_13 : f32 to vector<128x128xf32>
    %24 = arith.maximumf %22, %23 : vector<128x128xf32>
    %25 = vector.extract_strided_slice %24 {offsets = [0, 0], sizes = [64, 128], strides = [1, 1]} : vector<128x128xf32> to vector<64x128xf32>
    %cst_14 = arith.constant dense<0x7F800000> : vector<128xf32>
    %26 = vector.multi_reduction <minimumf>, %25, %cst_14 [0] : vector<64x128xf32> to vector<128xf32>
    %c0_15 = arith.constant 0 : index
    %c0_16 = arith.constant 0 : index
    %27 = vector.load %arg10[%c0_15, %c0_16] : memref<2x128xf32, #tpu.memory_space<vmem>>, vector<1x128xf32>
    %28 = vector.shape_cast %27 : vector<1x128xf32> to vector<128xf32>
    %29 = vector.shape_cast %26 : vector<128xf32> to vector<1x128xf32>
    tpu.vector_store %arg10[%c0_15, %c0_16], %29 {strides = array<i32>} : memref<2x128xf32, #tpu.memory_space<vmem>>, vector<1x128xf32>,
    %cst_17 = arith.constant dense<0.000000e+00> : vector<128xf32>
    %30 = vector.multi_reduction <add>, %25, %cst_17 [0] : vector<64x128xf32> to vector<128xf32>
    %cst_18 = arith.constant 6.400000e+01 : f32
    %31 = vector.broadcast %cst_18 : f32 to vector<128xf32>
    %32 = arith.divf %30, %31 : vector<128xf32>
    %c0_19 = arith.constant 0 : index
    %c0_20 = arith.constant 0 : index
    %33 = vector.load %arg11[%c0_19, %c0_20] : memref<2x128xf32, #tpu.memory_space<vmem>>, vector<1x128xf32>
    %34 = vector.shape_cast %33 : vector<1x128xf32> to vector<128xf32>
    %35 = vector.shape_cast %32 : vector<128xf32> to vector<1x128xf32>
    tpu.vector_store %arg11[%c0_19, %c0_20], %35 {strides = array<i32>} : memref<2x128xf32, #tpu.memory_space<vmem>>, vector<1x128xf32>,
    %36 = vector.extract_strided_slice %24 {offsets = [64, 0], sizes = [64, 128], strides = [1, 1]} : vector<128x128xf32> to vector<64x128xf32>
    %cst_21 = arith.constant dense<0x7F800000> : vector<128xf32>
    %37 = vector.multi_reduction <minimumf>, %36, %cst_21 [0] : vector<64x128xf32> to vector<128xf32>
    %c1 = arith.constant 1 : index
    %c0_22 = arith.constant 0 : index
    %38 = vector.load %arg10[%c1, %c0_22] : memref<2x128xf32, #tpu.memory_space<vmem>>, vector<1x128xf32>
    %39 = vector.shape_cast %38 : vector<1x128xf32> to vector<128xf32>
    %40 = vector.shape_cast %37 : vector<128xf32> to vector<1x128xf32>
    tpu.vector_store %arg10[%c1, %c0_22], %40 {strides = array<i32>} : memref<2x128xf32, #tpu.memory_space<vmem>>, vector<1x128xf32>,
    %cst_23 = arith.constant dense<0.000000e+00> : vector<128xf32>
    %41 = vector.multi_reduction <add>, %36, %cst_23 [0] : vector<64x128xf32> to vector<128xf32>
    %cst_24 = arith.constant 6.400000e+01 : f32
    %42 = vector.broadcast %cst_24 : f32 to vector<128xf32>
    %43 = arith.divf %41, %42 : vector<128xf32>
    %c1_25 = arith.constant 1 : index
    %c0_26 = arith.constant 0 : index
    %44 = vector.load %arg11[%c1_25, %c0_26] : memref<2x128xf32, #tpu.memory_space<vmem>>, vector<1x128xf32>
    %45 = vector.shape_cast %44 : vector<1x128xf32> to vector<128xf32>
    %46 = vector.shape_cast %43 : vector<128xf32> to vector<1x128xf32>
    tpu.vector_store %arg11[%c1_25, %c0_26], %46 {strides = array<i32>} : memref<2x128xf32, #tpu.memory_space<vmem>>, vector<1x128xf32>,
    %c0_27 = arith.constant 0 : index
    %c0_28 = arith.constant 0 : index
    %47 = vector.load %arg10[%c0_27, %c0_28] : memref<2x128xf32, #tpu.memory_space<vmem>>, vector<2x128xf32>
    %c0_29 = arith.constant 0 : index
    %c0_30 = arith.constant 0 : index
    %48 = vector.load %arg11[%c0_29, %c0_30] : memref<2x128xf32, #tpu.memory_space<vmem>>, vector<2x128xf32>
    %c0_31 = arith.constant 0 : index
    %c0_32 = arith.constant 0 : index
    %49 = vector.load %arg6[%c0_31, %c0_32] : memref<128x128xf32, #tpu.memory_space<vmem>>, vector<128x128xf32>
    %cst_33 = arith.constant dense<0.000000e+00> : vector<2x128xf32>
    %50 = tpu.matmul %47, %49, %cst_33 {dimension_numbers = #tpu.dot_dimension_numbers<[1], [0], [0], [1], [0, 0, 1, 1], [], []>} : vector<2x128xf32>, vector<128x128xf32>, vector<2x128xf32> -> vector<2x128xf32>
    %cst_34 = arith.constant dense<0.000000e+00> : vector<2x128xf32>
    %51 = tpu.matmul %48, %49, %cst_34 {dimension_numbers = #tpu.dot_dimension_numbers<[1], [0], [0], [1], [0, 0, 1, 1], [], []>} : vector<2x128xf32>, vector<128x128xf32>, vector<2x128xf32> -> vector<2x128xf32>
    %cst_35 = arith.constant 1.000000e+00 : f32
    %52 = vector.broadcast %cst_35 : f32 to vector<2x128xf32>
    %53 = arith.addf %50, %52 : vector<2x128xf32>
    %cst_36 = arith.constant 9.99999974E-5 : f32
    %54 = vector.broadcast %cst_36 : f32 to vector<2x128xf32>
    %55 = arith.addf %50, %54 : vector<2x128xf32>
    %56 = arith.divf %53, %55 : vector<2x128xf32>
    %57 = math.log %56 : vector<2x128xf32>
    %cst_37 = arith.constant 1.000000e+00 : f32
    %58 = vector.broadcast %cst_37 : f32 to vector<2x128xf32>
    %59 = arith.addf %51, %58 : vector<2x128xf32>
    %cst_38 = arith.constant 9.99999974E-5 : f32
    %60 = vector.broadcast %cst_38 : f32 to vector<2x128xf32>
    %61 = arith.addf %51, %60 : vector<2x128xf32>
    %62 = arith.divf %59, %61 : vector<2x128xf32>
    %63 = math.log %62 : vector<2x128xf32>
    %64 = arith.subf %57, %63 : vector<2x128xf32>
    %c0_39 = arith.constant 0 : index
    %c0_40 = arith.constant 0 : index
    %65 = vector.load %arg7[%c0_39, %c0_40] : memref<128x128xf32, #tpu.memory_space<vmem>>, vector<128x128xf32>
    %cst_41 = arith.constant dense<0.000000e+00> : vector<2x128xf32>
    %66 = tpu.matmul %64, %65, %cst_41 {dimension_numbers = #tpu.dot_dimension_numbers<[1], [0], [0], [1], [0, 0, 1, 1], [], []>} : vector<2x128xf32>, vector<128x128xf32>, vector<2x128xf32> -> vector<2x128xf32>
    %67 = vector.shape_cast %47 : vector<2x128xf32> to vector<1x2x128xf32>
    %c0_42 = arith.constant 0 : index
    %c0_43 = arith.constant 0 : index
    %c0_44 = arith.constant 0 : index
    %68 = vector.load %arg8[%c0_42, %c0_43, %c0_44] : memref<1x2x128xf32, #tpu.memory_space<vmem>>, vector<1x2x128xf32>
    tpu.vector_store %arg8[%c0_42, %c0_43, %c0_44], %67 {strides = array<i32>} : memref<1x2x128xf32, #tpu.memory_space<vmem>>, vector<1x2x128xf32>,
    %69 = vector.shape_cast %66 : vector<2x128xf32> to vector<1x2x128xf32>
    %c0_45 = arith.constant 0 : index
    %c0_46 = arith.constant 0 : index
    %c0_47 = arith.constant 0 : index
    %70 = vector.load %arg9[%c0_45, %c0_46, %c0_47] : memref<1x2x128xf32, #tpu.memory_space<vmem>>, vector<1x2x128xf32>
    tpu.vector_store %arg9[%c0_45, %c0_46, %c0_47], %69 {strides = array<i32>} : memref<1x2x128xf32, #tpu.memory_space<vmem>>, vector<1x2x128xf32>,
    return
  }
  func.func @transform_0(%arg0: i32) -> (i32, i32) {
    %c0_i32 = arith.constant 0 : i32
    %c0_i32_0 = arith.constant 0 : i32
    return %arg0, %c0_i32 : i32, i32
  }
  func.func @transform_1(%arg0: i32) -> (i32, i32) {
    %c0_i32 = arith.constant 0 : i32
    %c0_i32_0 = arith.constant 0 : i32
    %c0_i32_1 = arith.constant 0 : i32
    return %c0_i32, %c0_i32_0 : i32, i32
  }
  func.func @transform_2(%arg0: i32) -> (i32, i32) {
    %c0_i32 = arith.constant 0 : i32
    %c0_i32_0 = arith.constant 0 : i32
    %c0_i32_1 = arith.constant 0 : i32
    return %c0_i32, %c0_i32_0 : i32, i32
  }
  func.func @transform_3(%arg0: i32) -> (i32, i32) {
    %c0_i32 = arith.constant 0 : i32
    %c0_i32_0 = arith.constant 0 : i32
    %c0_i32_1 = arith.constant 0 : i32
    return %c0_i32, %c0_i32_0 : i32, i32
  }
  func.func @transform_4(%arg0: i32) -> (i32, i32) {
    %c0_i32 = arith.constant 0 : i32
    %c0_i32_0 = arith.constant 0 : i32
    %c0_i32_1 = arith.constant 0 : i32
    return %c0_i32, %c0_i32_0 : i32, i32
  }
  func.func @transform_5(%arg0: i32) -> (i32, i32) {
    %c0_i32 = arith.constant 0 : i32
    %c0_i32_0 = arith.constant 0 : i32
    %c0_i32_1 = arith.constant 0 : i32
    return %c0_i32, %c0_i32_0 : i32, i32
  }
  func.func @transform_6(%arg0: i32) -> (i32, i32) {
    %c0_i32 = arith.constant 0 : i32
    %c0_i32_0 = arith.constant 0 : i32
    %c0_i32_1 = arith.constant 0 : i32
    return %c0_i32, %c0_i32_0 : i32, i32
  }
  func.func @transform_7(%arg0: i32) -> (i32, i32, i32) {
    %c0_i32 = arith.constant 0 : i32
    %c0_i32_0 = arith.constant 0 : i32
    %c0_i32_1 = arith.constant 0 : i32
    return %arg0, %c0_i32, %c0_i32_0 : i32, i32, i32
  }
  func.func @transform_8(%arg0: i32) -> (i32, i32, i32) {
    %c0_i32 = arith.constant 0 : i32
    %c0_i32_0 = arith.constant 0 : i32
    %c0_i32_1 = arith.constant 0 : i32
    return %arg0, %c0_i32, %c0_i32_0 : i32, i32, i32
  }
}

</mosaic_0001>

<llo_original>
// kernel: tpu_custom_call.1
$region0: #{tpu_custom_call.1}
  #allocation0 [shape = 'u32[]', space=smem, size = 0x4, offset = 0x4, fixed_abs, tag = 'smem constant byte address 0x4 - core index']
  #allocation1 [shape = 'u32[144,128]{1,0:T(1,128)}', space=vmem, size = 0x12000, scoped, tag = 'internal scratch']
  #allocation2 [shape = 'f32[2,128]{1,0:T(2,128)}', space=vmem, size = 0x400, scoped, tag = 'scratch operand']
  #allocation3 [shape = 'f32[2,128]{1,0:T(2,128)}', space=vmem, size = 0x400, scoped, tag = 'scratch operand']
  %s0 = inlined_call_operand.vmem [shape: f32[128,32], index: 0, kind: input, shape index: {}]
  %s1 = inlined_call_operand.vmem [shape: f32[32,128], index: 1, kind: input, shape index: {}]
  %s2 = inlined_call_operand.vmem [shape: f32[1,128], index: 2, kind: input, shape index: {}]
  %s3 = inlined_call_operand.vmem [shape: f32[128,128], index: 3, kind: input, shape index: {}]
  %s4 = inlined_call_operand.vmem [shape: f32[1,128], index: 4, kind: input, shape index: {}]
  %s5 = inlined_call_operand.hbm [shape: f32[128,128], index: 5, kind: input, shape index: {}]
  %s6 = inlined_call_operand.hbm [shape: f32[128,128], index: 6, kind: input, shape index: {}]
  %s7 = inlined_call_operand.hbm [shape: f32[1,2,128], index: 7, kind: output, shape index: {0}]
  %s8 = inlined_call_operand.hbm [shape: f32[1,2,128], index: 8, kind: output, shape index: {1}]
  %9 = xla_tuple %s7, %s8
  %s10 = sld [smem:[#allocation0]]
  $region54: #{tpu_custom_call.1} parent=0
    _
  %s12 = ssub.s32 1, %s10
  %s13 = scalar_select 0, %s12, %s10
  $region1: #{tpu_custom_call.1} parent=0
    #allocation4 [shape = 'u8[65536]{0}', space=vmem, size = 0x10000, scoped, tag = 'input window, operand 5, single buffered']
    #allocation5 [shape = 's32[1]{0}', space=sflag, size = 0x4, scoped, tag = 'scoped memory for tpu_custom_call.1']
    #allocation6 [shape = 's32[1]{0}', space=sflag, size = 0x4, scoped, tag = 'scoped memory for tpu_custom_call.1']
    #allocation7 [shape = 'u8[65536]{0}', space=vmem, size = 0x10000, scoped, tag = 'input window, operand 6, single buffered']
    #allocation8 [shape = 's32[1]{0}', space=sflag, size = 0x4, scoped, tag = 'scoped memory for tpu_custom_call.1']
    #allocation9 [shape = 'u8[1024]{0}', space=vmem, size = 0x400, scoped, tag = 'output window, operand 0, single buffered']
    #allocation10 [shape = 'u8[1024]{0}', space=vmem, size = 0x400, scoped, tag = 'output window, operand 1, single buffered']
    #allocation11 [shape = 's32[1]{0}', space=sflag, size = 0x4, scoped, tag = 'scoped memory for tpu_custom_call.1']
    %14 = vsyncpa [#allocation5], 0
    %15 = vsyncpa [#allocation8], 0
    %16 = vsyncpa [#allocation6], 0
    %17 = vsyncpa [#allocation11], 0
    // Predicated region
    $region2: #{tpu_custom_call.1} parent=1 // pred_check
      _
    $region3: #{tpu_custom_call.1} parent=1 // pred_check_branch
      %19 = sbr.rel (0) target = $region5
    $region4: #{tpu_custom_call.1} parent=1 // pred_region
      _
    $region5: #{tpu_custom_call.1} parent=1 // pred_fallthru
      _
    // Predicated region
    $region6: #{tpu_custom_call.1} parent=1 // pred_check
      _
    $region7: #{tpu_custom_call.1} parent=1 // pred_check_branch
      %21 = sbr.rel (0) target = $region9
    $region8: #{tpu_custom_call.1} parent=1 // pred_region
      _
    $region9: #{tpu_custom_call.1} parent=1 // pred_fallthru
      _
    // Predicated region
    $region10: #{tpu_custom_call.1} parent=1 // pred_check
      _
    $region11: #{tpu_custom_call.1} parent=1 // pred_check_branch
      %23 = sbr.rel (0) target = $region13
    $region12: #{tpu_custom_call.1} parent=1 // pred_region
      _
    $region13: #{tpu_custom_call.1} parent=1 // pred_fallthru
      _
    // Predicated region
    $region14: #{tpu_custom_call.1} parent=1 // pred_check
      _
    $region15: #{tpu_custom_call.1} parent=1 // pred_check_branch
      %25 = sbr.rel (0) target = $region17
    $region16: #{tpu_custom_call.1} parent=1 // pred_region
      _
    $region17: #{tpu_custom_call.1} parent=1 // pred_fallthru
      _
    // Predicated region
    $region18: #{tpu_custom_call.1} parent=1 // pred_check
      _
    $region19: #{tpu_custom_call.1} parent=1 // pred_check_branch
      %27 = sbr.rel (0) target = $region21
    $region20: #{tpu_custom_call.1} parent=1 // pred_region
      _
    $region21: #{tpu_custom_call.1} parent=1 // pred_fallthru
      _
    // Predicated region
    $region22: #{tpu_custom_call.1} parent=1 // pred_check
      _
    $region23: #{tpu_custom_call.1} parent=1 // pred_check_branch
      %29 = sbr.rel (0) target = $region25
    $region24: #{tpu_custom_call.1} parent=1 // pred_region
      %s31 = ssub.s32 2048, 2048
      %32 = vsyncadd [#allocation5], %s31
      %s33 = sshll.u32 [#allocation4], 4
      %s34 = int_to_ptr.vmem [resolvable:$true] %s33
      %39 = dma.hbm_to_vmem [thread:$0]  %s5, 2048, %s34, [#allocation5], 128, 128, 8
    $region25: #{tpu_custom_call.1} parent=1 // pred_fallthru
      _
    // Predicated region
    $region26: #{tpu_custom_call.1} parent=1 // pred_check
      _
    $region27: #{tpu_custom_call.1} parent=1 // pred_check_branch
      %41 = sbr.rel (0) target = $region29
    $region28: #{tpu_custom_call.1} parent=1 // pred_region
      %s43 = ssub.s32 2048, 2048
      %44 = vsyncadd [#allocation8], %s43
      %s45 = sshll.u32 [#allocation7], 4
      %s46 = int_to_ptr.vmem [resolvable:$true] %s45
      %51 = dma.hbm_to_vmem [thread:$0]  %s6, 2048, %s46, [#allocation8], 128, 128, 8
    $region29: #{tpu_custom_call.1} parent=1 // pred_fallthru
      _
    // Predicated region
    $region30: #{tpu_custom_call.1} parent=1 // pred_check
      _
    $region31: #{tpu_custom_call.1} parent=1 // pred_check_branch
      %53 = sbr.rel (0) target = $region33
    $region32: #{tpu_custom_call.1} parent=1 // pred_region
      %54 = dma.done [#allocation5], 2048
    $region33: #{tpu_custom_call.1} parent=1 // pred_fallthru
      _
    // Predicated region
    $region34: #{tpu_custom_call.1} parent=1 // pred_check
      _
    $region35: #{tpu_custom_call.1} parent=1 // pred_check_branch
      %56 = sbr.rel (0) target = $region37
    $region36: #{tpu_custom_call.1} parent=1 // pred_region
      %57 = dma.done [#allocation8], 2048
    $region37: #{tpu_custom_call.1} parent=1 // pred_fallthru
      _
    %v58 = vld [vmem:[%s0] sm:$0xff]
    %v59 = vld [vmem:[%s0 + $0x8] sm:$0xff]
    %v60 = vld [vmem:[%s0 + $0x10] sm:$0xff]
    %v61 = vld [vmem:[%s0 + $0x18] sm:$0xff]
    %v62 = vld [vmem:[%s0 + $0x20] sm:$0xff]
    %v63 = vld [vmem:[%s0 + $0x28] sm:$0xff]
    %v64 = vld [vmem:[%s0 + $0x30] sm:$0xff]
    %v65 = vld [vmem:[%s0 + $0x38] sm:$0xff]
    %v66 = vld [vmem:[%s0 + $0x40] sm:$0xff]
    %v67 = vld [vmem:[%s0 + $0x48] sm:$0xff]
    %v68 = vld [vmem:[%s0 + $0x50] sm:$0xff]
    %v69 = vld [vmem:[%s0 + $0x58] sm:$0xff]
    %v70 = vld [vmem:[%s0 + $0x60] sm:$0xff]
    %v71 = vld [vmem:[%s0 + $0x68] sm:$0xff]
    %v72 = vld [vmem:[%s0 + $0x70] sm:$0xff]
    %v73 = vld [vmem:[%s0 + $0x78] sm:$0xff]
    %v74 = vld [vmem:[%s1] sm:$0xff]
    %v75 = vld [vmem:[%s1 + $0x8] sm:$0xff]
    %v76 = vld [vmem:[%s1 + $0x10] sm:$0xff]
    %v77 = vld [vmem:[%s1 + $0x18] sm:$0xff]
    %v78 = vld [vmem:[%s2] sm:$0x1]
    %v80 = vlaneseq
    %v81 = vshrl.u32 %v80, 7
    %v82 = vsub.s32 0, %v81
    %v83 = vrot.slane %v78, %v82
    %vm85 = vcmask 261120
    %v87 = vsel %vm85, %v58, 0
    %v90 = vsel %vm85, %v59, 0
    %v93 = vsel %vm85, %v60, 0
    %v96 = vsel %vm85, %v61, 0
    %v99 = vsel %vm85, %v62, 0
    %v102 = vsel %vm85, %v63, 0
    %v105 = vsel %vm85, %v64, 0
    %v108 = vsel %vm85, %v65, 0
    %v111 = vsel %vm85, %v66, 0
    %v114 = vsel %vm85, %v67, 0
    %v117 = vsel %vm85, %v68, 0
    %v120 = vsel %vm85, %v69, 0
    %v123 = vsel %vm85, %v70, 0
    %v126 = vsel %vm85, %v71, 0
    %v129 = vsel %vm85, %v72, 0
    %v132 = vsel %vm85, %v73, 0
    %134 = vmatprep.subr.mxu0 0.0
    %135 = vmatpush1.msra.mxu0 %v74
    %136 = vmatprep.subr.mxu0 0.0
    %137 = vmatpush1.msra.mxu0 %v75
    %138 = vmatprep.subr.mxu0 0.0
    %139 = vmatpush1.msra.mxu0 %v76
    %140 = vmatprep.subr.mxu0 0.0
    %141 = vmatpush1.msra.mxu0 %v77
    %142 = vmatprep.subr.mxu0 0.0
    %143 = vmatpush1.msra.mxu0 0.0
    %144 = vmatprep.subr.mxu0 0.0
    %145 = vmatpush1.msra.mxu0 0.0
    %146 = vmatprep.subr.mxu0 0.0
    %147 = vmatpush1.msra.mxu0 0.0
    %148 = vmatprep.subr.mxu0 0.0
    %149 = vmatpush1.msra.mxu0 0.0
    %150 = vmatprep.subr.mxu0 0.0
    %151 = vmatpush1.msra.mxu0 0.0
    %152 = vmatprep.subr.mxu0 0.0
    %153 = vmatpush1.msra.mxu0 0.0
    %154 = vmatprep.subr.mxu0 0.0
    %155 = vmatpush1.msra.mxu0 0.0
    %156 = vmatprep.subr.mxu0 0.0
    %157 = vmatpush1.msra.mxu0 0.0
    %158 = vmatprep.subr.mxu0 0.0
    %159 = vmatpush1.msra.mxu0 0.0
    %160 = vmatprep.subr.mxu0 0.0
    %161 = vmatpush1.msra.mxu0 0.0
    %162 = vmatprep.subr.mxu0 0.0
    %163 = vmatpush1.msra.mxu0 0.0
    %164 = vmatprep.subr.mxu0 0.0
    %165 = vmatpush1.msra.mxu0 0.0
    %166 = vmatprep.subr.mxu0 0.0
    %167 = vmatpush1.msra.mxu0 0.0
    %168 = vmatprep.subr.mxu0 0.0
    %169 = vmatpush1.msra.mxu0 0.0
    %170 = vmatprep.subr.mxu0 0.0
    %171 = vmatpush1.msra.mxu0 0.0
    %172 = vmatprep.subr.mxu0 0.0
    %173 = vmatpush1.msra.mxu0 0.0
    %174 = vmatprep.subr.mxu0 0.0
    %175 = vmatpush1.msra.mxu0 0.0
    %176 = vmatprep.subr.mxu0 0.0
    %177 = vmatpush1.msra.mxu0 0.0
    %178 = vmatprep.subr.mxu0 0.0
    %179 = vmatpush1.msra.mxu0 0.0
    %180 = vmatprep.subr.mxu0 0.0
    %181 = vmatpush1.msra.mxu0 0.0
    %182 = vmatprep.subr.mxu0 0.0
    %183 = vmatpush1.msra.mxu0 0.0
    %184 = vmatprep.subr.mxu0 0.0
    %185 = vmatpush1.msra.mxu0 0.0
    %186 = vmatprep.subr.mxu0 0.0
    %187 = vmatpush1.msra.mxu0 0.0
    %188 = vmatprep.subr.mxu0 0.0
    %189 = vmatpush1.msra.mxu0 0.0
    %190 = vmatprep.subr.mxu0 0.0
    %191 = vmatpush1.msra.mxu0 0.0
    %192 = vmatprep.subr.mxu0 0.0
    %193 = vmatpush1.msra.mxu0 0.0
    %194 = vmatprep.subr.mxu0 0.0
    %195 = vmatpush1.msra.mxu0 0.0
    %196 = vmatprep.subr.mxu0 0.0
    %197 = vmatpush1.msra.mxu0 0.0
    %198 = vmatprep.mubr.f32.mxu0 0.0
    %199 = vmatmul.mubr.f32.gmra.mrb[0].mxu0 %v87
    %v200 = vpop.f32.mrb[0].mxu0
    %v201 = vadd.f32 %v83, %v200
    %v202 = vpop.f32.mrb[0].mxu0
    %203 = vmatprep.mubr.f32.mxu0 0.0
    %204 = vmatmul.mubr.f32.gmra.mrb[0].mxu0 %v90
    %v205 = vpop.f32.mrb[0].mxu0
    %v206 = vadd.f32 %v83, %v205
    %v207 = vpop.f32.mrb[0].mxu0
    %208 = vmatprep.mubr.f32.mxu0 0.0
    %209 = vmatmul.mubr.f32.gmra.mrb[0].mxu0 %v93
    %v210 = vpop.f32.mrb[0].mxu0
    %v211 = vadd.f32 %v83, %v210
    %v212 = vpop.f32.mrb[0].mxu0
    %213 = vmatprep.mubr.f32.mxu0 0.0
    %214 = vmatmul.mubr.f32.gmra.mrb[0].mxu0 %v96
    %v215 = vpop.f32.mrb[0].mxu0
    %v216 = vadd.f32 %v83, %v215
    %v217 = vpop.f32.mrb[0].mxu0
    %218 = vmatprep.mubr.f32.mxu0 0.0
    %219 = vmatmul.mubr.f32.gmra.mrb[0].mxu0 %v99
    %v220 = vpop.f32.mrb[0].mxu0
    %v221 = vadd.f32 %v83, %v220
    %v222 = vpop.f32.mrb[0].mxu0
    %223 = vmatprep.mubr.f32.mxu0 0.0
    %224 = vmatmul.mubr.f32.gmra.mrb[0].mxu0 %v102
    %v225 = vpop.f32.mrb[0].mxu0
    %v226 = vadd.f32 %v83, %v225
    %v227 = vpop.f32.mrb[0].mxu0
    %228 = vmatprep.mubr.f32.mxu0 0.0
    %229 = vmatmul.mubr.f32.gmra.mrb[0].mxu0 %v105
    %v230 = vpop.f32.mrb[0].mxu0
    %v231 = vadd.f32 %v83, %v230
    %v232 = vpop.f32.mrb[0].mxu0
    %233 = vmatprep.mubr.f32.mxu0 0.0
    %234 = vmatmul.mubr.f32.gmra.mrb[0].mxu0 %v108
    %v235 = vpop.f32.mrb[0].mxu0
    %v236 = vadd.f32 %v83, %v235
    %v237 = vpop.f32.mrb[0].mxu0
    %238 = vmatprep.mubr.f32.mxu0 0.0
    %239 = vmatmul.mubr.f32.gmra.mrb[0].mxu0 %v111
    %v240 = vpop.f32.mrb[0].mxu0
    %v241 = vadd.f32 %v83, %v240
    %v242 = vpop.f32.mrb[0].mxu0
    %243 = vmatprep.mubr.f32.mxu0 0.0
    %244 = vmatmul.mubr.f32.gmra.mrb[0].mxu0 %v114
    %v245 = vpop.f32.mrb[0].mxu0
    %v246 = vadd.f32 %v83, %v245
    %v247 = vpop.f32.mrb[0].mxu0
    %248 = vmatprep.mubr.f32.mxu0 0.0
    %249 = vmatmul.mubr.f32.gmra.mrb[0].mxu0 %v117
    %v250 = vpop.f32.mrb[0].mxu0
    %v251 = vadd.f32 %v83, %v250
    %v252 = vpop.f32.mrb[0].mxu0
    %253 = vmatprep.mubr.f32.mxu0 0.0
    %254 = vmatmul.mubr.f32.gmra.mrb[0].mxu0 %v120
    %v255 = vpop.f32.mrb[0].mxu0
    %v256 = vadd.f32 %v83, %v255
    %v257 = vpop.f32.mrb[0].mxu0
    %258 = vmatprep.mubr.f32.mxu0 0.0
    %259 = vmatmul.mubr.f32.gmra.mrb[0].mxu0 %v123
    %v260 = vpop.f32.mrb[0].mxu0
    %v261 = vadd.f32 %v83, %v260
    %v262 = vpop.f32.mrb[0].mxu0
    %263 = vmatprep.mubr.f32.mxu0 0.0
    %264 = vmatmul.mubr.f32.gmra.mrb[0].mxu0 %v126
    %v265 = vpop.f32.mrb[0].mxu0
    %v266 = vadd.f32 %v83, %v265
    %v267 = vpop.f32.mrb[0].mxu0
    %268 = vmatprep.mubr.f32.mxu0 0.0
    %269 = vmatmul.mubr.f32.gmra.mrb[0].mxu0 %v129
    %v270 = vpop.f32.mrb[0].mxu0
    %v271 = vadd.f32 %v83, %v270
    %v272 = vpop.f32.mrb[0].mxu0
    %273 = vmatprep.mubr.f32.mxu0 0.0
    %274 = vmatmul.mubr.f32.gmra.mrb[0].mxu0 %v132
    %v275 = vpop.f32.mrb[0].mxu0
    %v276 = vadd.f32 %v83, %v275
    %v277 = vpop.f32.mrb[0].mxu0
    %278 = vdwg.mxu0
    %v279 = vxor.u32 %v201, 2147483648
    %v280 = vxor.u32 %v206, 2147483648
    %v281 = vxor.u32 %v211, 2147483648
    %v282 = vxor.u32 %v216, 2147483648
    %v283 = vxor.u32 %v221, 2147483648
    %v284 = vxor.u32 %v226, 2147483648
    %v285 = vxor.u32 %v231, 2147483648
    %v286 = vxor.u32 %v236, 2147483648
    %v287 = vxor.u32 %v241, 2147483648
    %v288 = vxor.u32 %v246, 2147483648
    %v289 = vxor.u32 %v251, 2147483648
    %v290 = vxor.u32 %v256, 2147483648
    %v291 = vxor.u32 %v261, 2147483648
    %v292 = vxor.u32 %v266, 2147483648
    %v293 = vxor.u32 %v271, 2147483648
    %v294 = vxor.u32 %v276, 2147483648
    %v295 = vmul.f32 %v279, 1.442695
    %v296 = vpow.pop %v295
    %v297 = vmul.f32 %v280, 1.442695
    %v298 = vpow.pop %v297
    %v299 = vmul.f32 %v281, 1.442695
    %v300 = vpow.pop %v299
    %v301 = vmul.f32 %v282, 1.442695
    %v302 = vpow.pop %v301
    %v303 = vmul.f32 %v283, 1.442695
    %v304 = vpow.pop %v303
    %v305 = vmul.f32 %v284, 1.442695
    %v306 = vpow.pop %v305
    %v307 = vmul.f32 %v285, 1.442695
    %v308 = vpow.pop %v307
    %v309 = vmul.f32 %v286, 1.442695
    %v310 = vpow.pop %v309
    %v311 = vmul.f32 %v287, 1.442695
    %v312 = vpow.pop %v311
    %v313 = vmul.f32 %v288, 1.442695
    %v314 = vpow.pop %v313
    %v315 = vmul.f32 %v289, 1.442695
    %v316 = vpow.pop %v315
    %v317 = vmul.f32 %v290, 1.442695
    %v318 = vpow.pop %v317
    %v319 = vmul.f32 %v291, 1.442695
    %v320 = vpow.pop %v319
    %v321 = vmul.f32 %v292, 1.442695
    %v322 = vpow.pop %v321
    %v323 = vmul.f32 %v293, 1.442695
    %v324 = vpow.pop %v323
    %v325 = vmul.f32 %v294, 1.442695
    %v326 = vpow.pop %v325
    %v327 = vadd.f32 %v296, 1.0
    %v328 = vadd.f32 %v298, 1.0
    %v329 = vadd.f32 %v300, 1.0
    %v330 = vadd.f32 %v302, 1.0
    %v331 = vadd.f32 %v304, 1.0
    %v332 = vadd.f32 %v306, 1.0
    %v333 = vadd.f32 %v308, 1.0
    %v334 = vadd.f32 %v310, 1.0
    %v335 = vadd.f32 %v312, 1.0
    %v336 = vadd.f32 %v314, 1.0
    %v337 = vadd.f32 %v316, 1.0
    %v338 = vadd.f32 %v318, 1.0
    %v339 = vadd.f32 %v320, 1.0
    %v340 = vadd.f32 %v322, 1.0
    %v341 = vadd.f32 %v324, 1.0
    %v342 = vadd.f32 %v326, 1.0
    %v343 = vrcp.pop %v327
    %v344 = vmul.f32 1.0, %v343
    %v345 = vrcp.pop %v328
    %v346 = vmul.f32 1.0, %v345
    %v347 = vrcp.pop %v329
    %v348 = vmul.f32 1.0, %v347
    %v349 = vrcp.pop %v330
    %v350 = vmul.f32 1.0, %v349
    %v351 = vrcp.pop %v331
    %v352 = vmul.f32 1.0, %v351
    %v353 = vrcp.pop %v332
    %v354 = vmul.f32 1.0, %v353
    %v355 = vrcp.pop %v333
    %v356 = vmul.f32 1.0, %v355
    %v357 = vrcp.pop %v334
    %v358 = vmul.f32 1.0, %v357
    %v359 = vrcp.pop %v335
    %v360 = vmul.f32 1.0, %v359
    %v361 = vrcp.pop %v336
    %v362 = vmul.f32 1.0, %v361
    %v363 = vrcp.pop %v337
    %v364 = vmul.f32 1.0, %v363
    %v365 = vrcp.pop %v338
    %v366 = vmul.f32 1.0, %v365
    %v367 = vrcp.pop %v339
    %v368 = vmul.f32 1.0, %v367
    %v369 = vrcp.pop %v340
    %v370 = vmul.f32 1.0, %v369
    %v371 = vrcp.pop %v341
    %v372 = vmul.f32 1.0, %v371
    %v373 = vrcp.pop %v342
    %v374 = vmul.f32 1.0, %v373
    %v375 = vmul.f32 %v344, %v344
    %v376 = vmul.f32 %v346, %v346
    %v377 = vmul.f32 %v348, %v348
    %v378 = vmul.f32 %v350, %v350
    %v379 = vmul.f32 %v352, %v352
    %v380 = vmul.f32 %v354, %v354
    %v381 = vmul.f32 %v356, %v356
    %v382 = vmul.f32 %v358, %v358
    %v383 = vmul.f32 %v360, %v360
    %v384 = vmul.f32 %v362, %v362
    %v385 = vmul.f32 %v364, %v364
    %v386 = vmul.f32 %v366, %v366
    %v387 = vmul.f32 %v368, %v368
    %v388 = vmul.f32 %v370, %v370
    %v389 = vmul.f32 %v372, %v372
    %v390 = vmul.f32 %v374, %v374
    %391 = vadd.xlane.f32.xlu0 %v375
    %v392 = vpop.xlane.xlu0 %391
    %393 = vadd.xlane.f32.xlu0 %v376
    %v394 = vpop.xlane.xlu0 %393
    %395 = vadd.xlane.f32.xlu0 %v377
    %v396 = vpop.xlane.xlu0 %395
    %397 = vadd.xlane.f32.xlu0 %v378
    %v398 = vpop.xlane.xlu0 %397
    %399 = vadd.xlane.f32.xlu0 %v379
    %v400 = vpop.xlane.xlu0 %399
    %401 = vadd.xlane.f32.xlu0 %v380
    %v402 = vpop.xlane.xlu0 %401
    %403 = vadd.xlane.f32.xlu0 %v381
    %v404 = vpop.xlane.xlu0 %403
    %405 = vadd.xlane.f32.xlu0 %v382
    %v406 = vpop.xlane.xlu0 %405
    %407 = vadd.xlane.f32.xlu0 %v383
    %v408 = vpop.xlane.xlu0 %407
    %409 = vadd.xlane.f32.xlu0 %v384
    %v410 = vpop.xlane.xlu0 %409
    %411 = vadd.xlane.f32.xlu0 %v385
    %v412 = vpop.xlane.xlu0 %411
    %413 = vadd.xlane.f32.xlu0 %v386
    %v414 = vpop.xlane.xlu0 %413
    %415 = vadd.xlane.f32.xlu0 %v387
    %v416 = vpop.xlane.xlu0 %415
    %417 = vadd.xlane.f32.xlu0 %v388
    %v418 = vpop.xlane.xlu0 %417
    %419 = vadd.xlane.f32.xlu0 %v389
    %v420 = vpop.xlane.xlu0 %419
    %421 = vadd.xlane.f32.xlu0 %v390
    %v422 = vpop.xlane.xlu0 %421
    %v423 = vld [vmem:[%s3] sm:$0xff]
    %v424 = vld [vmem:[%s3 + $0x8] sm:$0xff]
    %v425 = vld [vmem:[%s3 + $0x10] sm:$0xff]
    %v426 = vld [vmem:[%s3 + $0x18] sm:$0xff]
    %v427 = vld [vmem:[%s3 + $0x20] sm:$0xff]
    %v428 = vld [vmem:[%s3 + $0x28] sm:$0xff]
    %v429 = vld [vmem:[%s3 + $0x30] sm:$0xff]
    %v430 = vld [vmem:[%s3 + $0x38] sm:$0xff]
    %v431 = vld [vmem:[%s3 + $0x40] sm:$0xff]
    %v432 = vld [vmem:[%s3 + $0x48] sm:$0xff]
    %v433 = vld [vmem:[%s3 + $0x50] sm:$0xff]
    %v434 = vld [vmem:[%s3 + $0x58] sm:$0xff]
    %v435 = vld [vmem:[%s3 + $0x60] sm:$0xff]
    %v436 = vld [vmem:[%s3 + $0x68] sm:$0xff]
    %v437 = vld [vmem:[%s3 + $0x70] sm:$0xff]
    %v438 = vld [vmem:[%s3 + $0x78] sm:$0xff]
    %439 = vmatprep.subr.mxu0 0.0
    %440 = vmatpush1.msra.mxu0 %v423
    %441 = vmatprep.subr.mxu0 0.0
    %442 = vmatpush1.msra.mxu0 %v424
    %443 = vmatprep.subr.mxu0 0.0
    %444 = vmatpush1.msra.mxu0 %v425
    %445 = vmatprep.subr.mxu0 0.0
    %446 = vmatpush1.msra.mxu0 %v426
    %447 = vmatprep.subr.mxu0 0.0
    %448 = vmatpush1.msra.mxu0 %v427
    %449 = vmatprep.subr.mxu0 0.0
    %450 = vmatpush1.msra.mxu0 %v428
    %451 = vmatprep.subr.mxu0 0.0
    %452 = vmatpush1.msra.mxu0 %v429
    %453 = vmatprep.subr.mxu0 0.0
    %454 = vmatpush1.msra.mxu0 %v430
    %455 = vmatprep.subr.mxu0 0.0
    %456 = vmatpush1.msra.mxu0 %v431
    %457 = vmatprep.subr.mxu0 0.0
    %458 = vmatpush1.msra.mxu0 %v432
    %459 = vmatprep.subr.mxu0 0.0
    %460 = vmatpush1.msra.mxu0 %v433
    %461 = vmatprep.subr.mxu0 0.0
    %462 = vmatpush1.msra.mxu0 %v434
    %463 = vmatprep.subr.mxu0 0.0
    %464 = vmatpush1.msra.mxu0 %v435
    %465 = vmatprep.subr.mxu0 0.0
    %466 = vmatpush1.msra.mxu0 %v436
    %467 = vmatprep.subr.mxu0 0.0
    %468 = vmatpush1.msra.mxu0 %v437
    %469 = vmatprep.subr.mxu0 0.0
    %470 = vmatpush1.msra.mxu0 %v438
    %471 = vmatprep.subr.mxu0 0.0
    %472 = vmatpush1.msra.mxu0 0.0
    %473 = vmatprep.subr.mxu0 0.0
    %474 = vmatpush1.msra.mxu0 0.0
    %475 = vmatprep.subr.mxu0 0.0
    %476 = vmatpush1.msra.mxu0 0.0
    %477 = vmatprep.subr.mxu0 0.0
    %478 = vmatpush1.msra.mxu0 0.0
    %479 = vmatprep.subr.mxu0 0.0
    %480 = vmatpush1.msra.mxu0 0.0
    %481 = vmatprep.subr.mxu0 0.0
    %482 = vmatpush1.msra.mxu0 0.0
    %483 = vmatprep.subr.mxu0 0.0
    %484 = vmatpush1.msra.mxu0 0.0
    %485 = vmatprep.subr.mxu0 0.0
    %486 = vmatpush1.msra.mxu0 0.0
    %487 = vmatprep.subr.mxu0 0.0
    %488 = vmatpush1.msra.mxu0 0.0
    %489 = vmatprep.subr.mxu0 0.0
    %490 = vmatpush1.msra.mxu0 0.0
    %491 = vmatprep.subr.mxu0 0.0
    %492 = vmatpush1.msra.mxu0 0.0
    %493 = vmatprep.subr.mxu0 0.0
    %494 = vmatpush1.msra.mxu0 0.0
    %495 = vmatprep.subr.mxu0 0.0
    %496 = vmatpush1.msra.mxu0 0.0
    %497 = vmatprep.subr.mxu0 0.0
    %498 = vmatpush1.msra.mxu0 0.0
    %499 = vmatprep.subr.mxu0 0.0
    %500 = vmatpush1.msra.mxu0 0.0
    %501 = vmatprep.subr.mxu0 0.0
    %502 = vmatpush1.msra.mxu0 0.0
    %503 = vmatprep.mubr.f32.mxu0 0.0
    %504 = vmatmul.mubr.f32.gmra.mrb[0].mxu0 %v344
    %v505 = vpop.f32.mrb[0].mxu0
    %v506 = vadd.f32 0.0, %v505
    %v507 = vpop.f32.mrb[0].mxu0
    %508 = vmatprep.mubr.f32.mxu0 0.0
    %509 = vmatmul.mubr.f32.gmra.mrb[0].mxu0 %v346
    %v510 = vpop.f32.mrb[0].mxu0
    %v511 = vadd.f32 0.0, %v510
    %v512 = vpop.f32.mrb[0].mxu0
    %513 = vmatprep.mubr.f32.mxu0 0.0
    %514 = vmatmul.mubr.f32.gmra.mrb[0].mxu0 %v348
    %v515 = vpop.f32.mrb[0].mxu0
    %v516 = vadd.f32 0.0, %v515
    %v517 = vpop.f32.mrb[0].mxu0
    %518 = vmatprep.mubr.f32.mxu0 0.0
    %519 = vmatmul.mubr.f32.gmra.mrb[0].mxu0 %v350
    %v520 = vpop.f32.mrb[0].mxu0
    %v521 = vadd.f32 0.0, %v520
    %v522 = vpop.f32.mrb[0].mxu0
    %523 = vmatprep.mubr.f32.mxu0 0.0
    %524 = vmatmul.mubr.f32.gmra.mrb[0].mxu0 %v352
    %v525 = vpop.f32.mrb[0].mxu0
    %v526 = vadd.f32 0.0, %v525
    %v527 = vpop.f32.mrb[0].mxu0
    %528 = vmatprep.mubr.f32.mxu0 0.0
    %529 = vmatmul.mubr.f32.gmra.mrb[0].mxu0 %v354
    %v530 = vpop.f32.mrb[0].mxu0
    %v531 = vadd.f32 0.0, %v530
    %v532 = vpop.f32.mrb[0].mxu0
    %533 = vmatprep.mubr.f32.mxu0 0.0
    %534 = vmatmul.mubr.f32.gmra.mrb[0].mxu0 %v356
    %v535 = vpop.f32.mrb[0].mxu0
    %v536 = vadd.f32 0.0, %v535
    %v537 = vpop.f32.mrb[0].mxu0
    %538 = vmatprep.mubr.f32.mxu0 0.0
    %539 = vmatmul.mubr.f32.gmra.mrb[0].mxu0 %v358
    %v540 = vpop.f32.mrb[0].mxu0
    %v541 = vadd.f32 0.0, %v540
    %v542 = vpop.f32.mrb[0].mxu0
    %543 = vmatprep.mubr.f32.mxu0 0.0
    %544 = vmatmul.mubr.f32.gmra.mrb[0].mxu0 %v360
    %v545 = vpop.f32.mrb[0].mxu0
    %v546 = vadd.f32 0.0, %v545
    %v547 = vpop.f32.mrb[0].mxu0
    %548 = vmatprep.mubr.f32.mxu0 0.0
    %549 = vmatmul.mubr.f32.gmra.mrb[0].mxu0 %v362
    %v550 = vpop.f32.mrb[0].mxu0
    %v551 = vadd.f32 0.0, %v550
    %v552 = vpop.f32.mrb[0].mxu0
    %553 = vmatprep.mubr.f32.mxu0 0.0
    %554 = vmatmul.mubr.f32.gmra.mrb[0].mxu0 %v364
    %v555 = vpop.f32.mrb[0].mxu0
    %v556 = vadd.f32 0.0, %v555
    %v557 = vpop.f32.mrb[0].mxu0
    %558 = vmatprep.mubr.f32.mxu0 0.0
    %559 = vmatmul.mubr.f32.gmra.mrb[0].mxu0 %v366
    %v560 = vpop.f32.mrb[0].mxu0
    %v561 = vadd.f32 0.0, %v560
    %v562 = vpop.f32.mrb[0].mxu0
    %563 = vmatprep.mubr.f32.mxu0 0.0
    %564 = vmatmul.mubr.f32.gmra.mrb[0].mxu0 %v368
    %v565 = vpop.f32.mrb[0].mxu0
    %v566 = vadd.f32 0.0, %v565
    %v567 = vpop.f32.mrb[0].mxu0
    %568 = vmatprep.mubr.f32.mxu0 0.0
    %569 = vmatmul.mubr.f32.gmra.mrb[0].mxu0 %v370
    %v570 = vpop.f32.mrb[0].mxu0
    %v571 = vadd.f32 0.0, %v570
    %v572 = vpop.f32.mrb[0].mxu0
    %573 = vmatprep.mubr.f32.mxu0 0.0
    %574 = vmatmul.mubr.f32.gmra.mrb[0].mxu0 %v372
    %v575 = vpop.f32.mrb[0].mxu0
    %v576 = vadd.f32 0.0, %v575
    %v577 = vpop.f32.mrb[0].mxu0
    %578 = vmatprep.mubr.f32.mxu0 0.0
    %579 = vmatmul.mubr.f32.gmra.mrb[0].mxu0 %v374
    %v580 = vpop.f32.mrb[0].mxu0
    %v581 = vadd.f32 0.0, %v580
    %v582 = vpop.f32.mrb[0].mxu0
    %583 = vdwg.mxu0
    %v584 = vmul.f32 %v506, 2.0
    %v585 = vmul.f32 %v511, 2.0
    %v586 = vmul.f32 %v516, 2.0
    %v587 = vmul.f32 %v521, 2.0
    %v588 = vmul.f32 %v526, 2.0
    %v589 = vmul.f32 %v531, 2.0
    %v590 = vmul.f32 %v536, 2.0
    %v591 = vmul.f32 %v541, 2.0
    %v592 = vmul.f32 %v546, 2.0
    %v593 = vmul.f32 %v551, 2.0
    %v594 = vmul.f32 %v556, 2.0
    %v595 = vmul.f32 %v561, 2.0
    %v596 = vmul.f32 %v566, 2.0
    %v597 = vmul.f32 %v571, 2.0
    %v598 = vmul.f32 %v576, 2.0
    %v599 = vmul.f32 %v581, 2.0
    %v600 = vsub.f32 %v392, %v584
    %v601 = vsub.f32 %v394, %v585
    %v602 = vsub.f32 %v396, %v586
    %v603 = vsub.f32 %v398, %v587
    %v604 = vsub.f32 %v400, %v588
    %v605 = vsub.f32 %v402, %v589
    %v606 = vsub.f32 %v404, %v590
    %v607 = vsub.f32 %v406, %v591
    %v608 = vsub.f32 %v408, %v592
    %v609 = vsub.f32 %v410, %v593
    %v610 = vsub.f32 %v412, %v594
    %v611 = vsub.f32 %v414, %v595
    %v612 = vsub.f32 %v416, %v596
    %v613 = vsub.f32 %v418, %v597
    %v614 = vsub.f32 %v420, %v598
    %v615 = vsub.f32 %v422, %v599
    %v616 = vld [vmem:[%s4] sm:$0x1]
    %v618 = vlaneseq
    %v619 = vshrl.u32 %v618, 7
    %v620 = vsub.s32 0, %v619
    %v621 = vrot.slane %v616, %v620
    %v623 = vadd.f32 %v600, %v621
    %v624 = vadd.f32 %v601, %v621
    %v625 = vadd.f32 %v602, %v621
    %v626 = vadd.f32 %v603, %v621
    %v627 = vadd.f32 %v604, %v621
    %v628 = vadd.f32 %v605, %v621
    %v629 = vadd.f32 %v606, %v621
    %v630 = vadd.f32 %v607, %v621
    %v631 = vadd.f32 %v608, %v621
    %v632 = vadd.f32 %v609, %v621
    %v633 = vadd.f32 %v610, %v621
    %v634 = vadd.f32 %v611, %v621
    %v635 = vadd.f32 %v612, %v621
    %v636 = vadd.f32 %v613, %v621
    %v637 = vadd.f32 %v614, %v621
    %v638 = vadd.f32 %v615, %v621
    %v639 = vmax.f32 %v623, 0.0
    %v640 = vmax.f32 %v624, 0.0
    %v641 = vmax.f32 %v625, 0.0
    %v642 = vmax.f32 %v626, 0.0
    %v643 = vmax.f32 %v627, 0.0
    %v644 = vmax.f32 %v628, 0.0
    %v645 = vmax.f32 %v629, 0.0
    %v646 = vmax.f32 %v630, 0.0
    %v647 = vmax.f32 %v631, 0.0
    %v648 = vmax.f32 %v632, 0.0
    %v649 = vmax.f32 %v633, 0.0
    %v650 = vmax.f32 %v634, 0.0
    %v651 = vmax.f32 %v635, 0.0
    %v652 = vmax.f32 %v636, 0.0
    %v653 = vmax.f32 %v637, 0.0
    %v654 = vmax.f32 %v638, 0.0
    %v655 = vmin.f32 %v639, %v643
    %v656 = vmin.f32 %v640, %v644
    %v657 = vmin.f32 %v641, %v645
    %v658 = vmin.f32 %v642, %v646
    %v659 = vmin.f32 %v655, %v656
    %v660 = vmin.f32 %v657, %v658
    %v661 = vmin.f32 %v659, %v660
    %v662 = vrot.slane %v661, 4
    %v663 = vmin.f32 %v661, %v662
    %v664 = vrot.slane %v663, 2
    %v665 = vmin.f32 %v663, %v664
    %v666 = vrot.slane %v665, 1
    %v667 = vmin.f32 %v665, %v666
    %668 = vst [vmem:[#allocation2] sm:$0x1] %v667
    %v669 = vadd.f32 %v639, %v640
    %v670 = vadd.f32 %v669, %v641
    %v671 = vadd.f32 %v670, %v642
    %v672 = vadd.f32 %v671, %v643
    %v673 = vadd.f32 %v672, %v644
    %v674 = vadd.f32 %v673, %v645
    %v675 = vadd.f32 %v674, %v646
    %v676 = vrot.slane %v675, 4
    %v677 = vadd.f32 %v675, %v676
    %v678 = vrot.slane %v677, 2
    %v679 = vadd.f32 %v677, %v678
    %v680 = vrot.slane %v679, 1
    %v681 = vadd.f32 %v679, %v680
    %v682 = vrcp.pop 64.0
    %v683 = vmul.f32 %v681, %v682
    %684 = vst [vmem:[#allocation3] sm:$0x1] %v683
    %v685 = vmin.f32 %v647, %v651
    %v686 = vmin.f32 %v648, %v652
    %v687 = vmin.f32 %v649, %v653
    %v688 = vmin.f32 %v650, %v654
    %v689 = vmin.f32 %v685, %v686
    %v690 = vmin.f32 %v687, %v688
    %v691 = vmin.f32 %v689, %v690
    %v692 = vrot.slane %v691, 4
    %v693 = vmin.f32 %v691, %v692
    %v694 = vrot.slane %v693, 2
    %v695 = vmin.f32 %v693, %v694
    %v696 = vrot.slane %v695, 1
    %v697 = vmin.f32 %v695, %v696
    %698 = vst [vmem:[#allocation2 + $0x1] sm:$0x1] %v697
    %v699 = vadd.f32 %v647, %v648
    %v700 = vadd.f32 %v699, %v649
    %v701 = vadd.f32 %v700, %v650
    %v702 = vadd.f32 %v701, %v651
    %v703 = vadd.f32 %v702, %v652
    %v704 = vadd.f32 %v703, %v653
    %v705 = vadd.f32 %v704, %v654
    %v706 = vrot.slane %v705, 4
    %v707 = vadd.f32 %v705, %v706
    %v708 = vrot.slane %v707, 2
    %v709 = vadd.f32 %v707, %v708
    %v710 = vrot.slane %v709, 1
    %v711 = vadd.f32 %v709, %v710
    %v712 = vmul.f32 %v711, %v682
    %713 = vst [vmem:[#allocation3 + $0x1] sm:$0x1] %v712
    %v714 = vld [vmem:[#allocation2] sm:$0x3]
    %v715 = vld [vmem:[#allocation3] sm:$0x3]
    %v716 = vld [vmem:[#allocation4] sm:$0xff]
    %v717 = vld [vmem:[#allocation4 + $0x8] sm:$0xff]
    %v718 = vld [vmem:[#allocation4 + $0x10] sm:$0xff]
    %v719 = vld [vmem:[#allocation4 + $0x18] sm:$0xff]
    %v720 = vld [vmem:[#allocation4 + $0x20] sm:$0xff]
    %v721 = vld [vmem:[#allocation4 + $0x28] sm:$0xff]
    %v722 = vld [vmem:[#allocation4 + $0x30] sm:$0xff]
    %v723 = vld [vmem:[#allocation4 + $0x38] sm:$0xff]
    %v724 = vld [vmem:[#allocation4 + $0x40] sm:$0xff]
    %v725 = vld [vmem:[#allocation4 + $0x48] sm:$0xff]
    %v726 = vld [vmem:[#allocation4 + $0x50] sm:$0xff]
    %v727 = vld [vmem:[#allocation4 + $0x58] sm:$0xff]
    %v728 = vld [vmem:[#allocation4 + $0x60] sm:$0xff]
    %v729 = vld [vmem:[#allocation4 + $0x68] sm:$0xff]
    %v730 = vld [vmem:[#allocation4 + $0x70] sm:$0xff]
    %v731 = vld [vmem:[#allocation4 + $0x78] sm:$0xff]
    %732 = vmatprep.subr.mxu0 0.0
    %733 = vmatpush1.msra.mxu0 %v716
    %734 = vmatprep.subr.mxu0 0.0
    %735 = vmatpush1.msra.mxu0 %v717
    %736 = vmatprep.subr.mxu0 0.0
    %737 = vmatpush1.msra.mxu0 %v718
    %738 = vmatprep.subr.mxu0 0.0
    %739 = vmatpush1.msra.mxu0 %v719
    %740 = vmatprep.subr.mxu0 0.0
    %741 = vmatpush1.msra.mxu0 %v720
    %742 = vmatprep.subr.mxu0 0.0
    %743 = vmatpush1.msra.mxu0 %v721
    %744 = vmatprep.subr.mxu0 0.0
    %745 = vmatpush1.msra.mxu0 %v722
    %746 = vmatprep.subr.mxu0 0.0
    %747 = vmatpush1.msra.mxu0 %v723
    %748 = vmatprep.subr.mxu0 0.0
    %749 = vmatpush1.msra.mxu0 %v724
    %750 = vmatprep.subr.mxu0 0.0
    %751 = vmatpush1.msra.mxu0 %v725
    %752 = vmatprep.subr.mxu0 0.0
    %753 = vmatpush1.msra.mxu0 %v726
    %754 = vmatprep.subr.mxu0 0.0
    %755 = vmatpush1.msra.mxu0 %v727
    %756 = vmatprep.subr.mxu0 0.0
    %757 = vmatpush1.msra.mxu0 %v728
    %758 = vmatprep.subr.mxu0 0.0
    %759 = vmatpush1.msra.mxu0 %v729
    %760 = vmatprep.subr.mxu0 0.0
    %761 = vmatpush1.msra.mxu0 %v730
    %762 = vmatprep.subr.mxu0 0.0
    %763 = vmatpush1.msra.mxu0 %v731
    %764 = vmatprep.subr.mxu0 0.0
    %765 = vmatpush1.msra.mxu0 0.0
    %766 = vmatprep.subr.mxu0 0.0
    %767 = vmatpush1.msra.mxu0 0.0
    %768 = vmatprep.subr.mxu0 0.0
    %769 = vmatpush1.msra.mxu0 0.0
    %770 = vmatprep.subr.mxu0 0.0
    %771 = vmatpush1.msra.mxu0 0.0
    %772 = vmatprep.subr.mxu0 0.0
    %773 = vmatpush1.msra.mxu0 0.0
    %774 = vmatprep.subr.mxu0 0.0
    %775 = vmatpush1.msra.mxu0 0.0
    %776 = vmatprep.subr.mxu0 0.0
    %777 = vmatpush1.msra.mxu0 0.0
    %778 = vmatprep.subr.mxu0 0.0
    %779 = vmatpush1.msra.mxu0 0.0
    %780 = vmatprep.subr.mxu0 0.0
    %781 = vmatpush1.msra.mxu0 0.0
    %782 = vmatprep.subr.mxu0 0.0
    %783 = vmatpush1.msra.mxu0 0.0
    %784 = vmatprep.subr.mxu0 0.0
    %785 = vmatpush1.msra.mxu0 0.0
    %786 = vmatprep.subr.mxu0 0.0
    %787 = vmatpush1.msra.mxu0 0.0
    %788 = vmatprep.subr.mxu0 0.0
    %789 = vmatpush1.msra.mxu0 0.0
    %790 = vmatprep.subr.mxu0 0.0
    %791 = vmatpush1.msra.mxu0 0.0
    %792 = vmatprep.subr.mxu0 0.0
    %793 = vmatpush1.msra.mxu0 0.0
    %794 = vmatprep.subr.mxu0 0.0
    %795 = vmatpush1.msra.mxu0 0.0
    %796 = vmatprep.mubr.f32.mxu0 0.0
    %797 = vmatmul.mubr.f32.gmra.mrb[0].mxu0 %v714
    %v798 = vpop.f32.mrb[0].mxu0
    %v799 = vadd.f32 0.0, %v798
    %v800 = vpop.f32.mrb[0].mxu0
    %801 = vdwg.mxu0
    %802 = vmatprep.subr.mxu0 0.0
    %803 = vmatpush1.msra.mxu0 %v716
    %804 = vmatprep.subr.mxu0 0.0
    %805 = vmatpush1.msra.mxu0 %v717
    %806 = vmatprep.subr.mxu0 0.0
    %807 = vmatpush1.msra.mxu0 %v718
    %808 = vmatprep.subr.mxu0 0.0
    %809 = vmatpush1.msra.mxu0 %v719
    %810 = vmatprep.subr.mxu0 0.0
    %811 = vmatpush1.msra.mxu0 %v720
    %812 = vmatprep.subr.mxu0 0.0
    %813 = vmatpush1.msra.mxu0 %v721
    %814 = vmatprep.subr.mxu0 0.0
    %815 = vmatpush1.msra.mxu0 %v722
    %816 = vmatprep.subr.mxu0 0.0
    %817 = vmatpush1.msra.mxu0 %v723
    %818 = vmatprep.subr.mxu0 0.0
    %819 = vmatpush1.msra.mxu0 %v724
    %820 = vmatprep.subr.mxu0 0.0
    %821 = vmatpush1.msra.mxu0 %v725
    %822 = vmatprep.subr.mxu0 0.0
    %823 = vmatpush1.msra.mxu0 %v726
    %824 = vmatprep.subr.mxu0 0.0
    %825 = vmatpush1.msra.mxu0 %v727
    %826 = vmatprep.subr.mxu0 0.0
    %827 = vmatpush1.msra.mxu0 %v728
    %828 = vmatprep.subr.mxu0 0.0
    %829 = vmatpush1.msra.mxu0 %v729
    %830 = vmatprep.subr.mxu0 0.0
    %831 = vmatpush1.msra.mxu0 %v730
    %832 = vmatprep.subr.mxu0 0.0
    %833 = vmatpush1.msra.mxu0 %v731
    %834 = vmatprep.subr.mxu0 0.0
    %835 = vmatpush1.msra.mxu0 0.0
    %836 = vmatprep.subr.mxu0 0.0
    %837 = vmatpush1.msra.mxu0 0.0
    %838 = vmatprep.subr.mxu0 0.0
    %839 = vmatpush1.msra.mxu0 0.0
    %840 = vmatprep.subr.mxu0 0.0
    %841 = vmatpush1.msra.mxu0 0.0
    %842 = vmatprep.subr.mxu0 0.0
    %843 = vmatpush1.msra.mxu0 0.0
    %844 = vmatprep.subr.mxu0 0.0
    %845 = vmatpush1.msra.mxu0 0.0
    %846 = vmatprep.subr.mxu0 0.0
    %847 = vmatpush1.msra.mxu0 0.0
    %848 = vmatprep.subr.mxu0 0.0
    %849 = vmatpush1.msra.mxu0 0.0
    %850 = vmatprep.subr.mxu0 0.0
    %851 = vmatpush1.msra.mxu0 0.0
    %852 = vmatprep.subr.mxu0 0.0
    %853 = vmatpush1.msra.mxu0 0.0
    %854 = vmatprep.subr.mxu0 0.0
    %855 = vmatpush1.msra.mxu0 0.0
    %856 = vmatprep.subr.mxu0 0.0
    %857 = vmatpush1.msra.mxu0 0.0
    %858 = vmatprep.subr.mxu0 0.0
    %859 = vmatpush1.msra.mxu0 0.0
    %860 = vmatprep.subr.mxu0 0.0
    %861 = vmatpush1.msra.mxu0 0.0
    %862 = vmatprep.subr.mxu0 0.0
    %863 = vmatpush1.msra.mxu0 0.0
    %864 = vmatprep.subr.mxu0 0.0
    %865 = vmatpush1.msra.mxu0 0.0
    %866 = vmatprep.mubr.f32.mxu0 0.0
    %867 = vmatmul.mubr.f32.gmra.mrb[0].mxu0 %v715
    %v868 = vpop.f32.mrb[0].mxu0
    %v869 = vadd.f32 0.0, %v868
    %v870 = vpop.f32.mrb[0].mxu0
    %871 = vdwg.mxu0
    %v872 = vadd.f32 %v799, 1.0
    %v873 = vadd.f32 %v799, 0.0001
    %v874 = vrcp.pop %v873
    %v875 = vmul.f32 %v872, %v874
    %v876 = vlog2.pop %v875
    %v877 = vmul.f32 %v876, 0.6931472
    %v878 = vadd.f32 %v869, 1.0
    %v879 = vadd.f32 %v869, 0.0001
    %v880 = vrcp.pop %v879
    %v881 = vmul.f32 %v878, %v880
    %v882 = vlog2.pop %v881
    %v883 = vmul.f32 %v882, 0.6931472
    %v884 = vsub.f32 %v877, %v883
    %v885 = vld [vmem:[#allocation7] sm:$0xff]
    %v886 = vld [vmem:[#allocation7 + $0x8] sm:$0xff]
    %v887 = vld [vmem:[#allocation7 + $0x10] sm:$0xff]
    %v888 = vld [vmem:[#allocation7 + $0x18] sm:$0xff]
    %v889 = vld [vmem:[#allocation7 + $0x20] sm:$0xff]
    %v890 = vld [vmem:[#allocation7 + $0x28] sm:$0xff]
    %v891 = vld [vmem:[#allocation7 + $0x30] sm:$0xff]
    %v892 = vld [vmem:[#allocation7 + $0x38] sm:$0xff]
    %v893 = vld [vmem:[#allocation7 + $0x40] sm:$0xff]
    %v894 = vld [vmem:[#allocation7 + $0x48] sm:$0xff]
    %v895 = vld [vmem:[#allocation7 + $0x50] sm:$0xff]
    %v896 = vld [vmem:[#allocation7 + $0x58] sm:$0xff]
    %v897 = vld [vmem:[#allocation7 + $0x60] sm:$0xff]
    %v898 = vld [vmem:[#allocation7 + $0x68] sm:$0xff]
    %v899 = vld [vmem:[#allocation7 + $0x70] sm:$0xff]
    %v900 = vld [vmem:[#allocation7 + $0x78] sm:$0xff]
    %901 = vmatprep.subr.mxu0 0.0
    %902 = vmatpush1.msra.mxu0 %v885
    %903 = vmatprep.subr.mxu0 0.0
    %904 = vmatpush1.msra.mxu0 %v886
    %905 = vmatprep.subr.mxu0 0.0
    %906 = vmatpush1.msra.mxu0 %v887
    %907 = vmatprep.subr.mxu0 0.0
    %908 = vmatpush1.msra.mxu0 %v888
    %909 = vmatprep.subr.mxu0 0.0
    %910 = vmatpush1.msra.mxu0 %v889
    %911 = vmatprep.subr.mxu0 0.0
    %912 = vmatpush1.msra.mxu0 %v890
    %913 = vmatprep.subr.mxu0 0.0
    %914 = vmatpush1.msra.mxu0 %v891
    %915 = vmatprep.subr.mxu0 0.0
    %916 = vmatpush1.msra.mxu0 %v892
    %917 = vmatprep.subr.mxu0 0.0
    %918 = vmatpush1.msra.mxu0 %v893
    %919 = vmatprep.subr.mxu0 0.0
    %920 = vmatpush1.msra.mxu0 %v894
    %921 = vmatprep.subr.mxu0 0.0
    %922 = vmatpush1.msra.mxu0 %v895
    %923 = vmatprep.subr.mxu0 0.0
    %924 = vmatpush1.msra.mxu0 %v896
    %925 = vmatprep.subr.mxu0 0.0
    %926 = vmatpush1.msra.mxu0 %v897
    %927 = vmatprep.subr.mxu0 0.0
    %928 = vmatpush1.msra.mxu0 %v898
    %929 = vmatprep.subr.mxu0 0.0
    %930 = vmatpush1.msra.mxu0 %v899
    %931 = vmatprep.subr.mxu0 0.0
    %932 = vmatpush1.msra.mxu0 %v900
    %933 = vmatprep.subr.mxu0 0.0
    %934 = vmatpush1.msra.mxu0 0.0
    %935 = vmatprep.subr.mxu0 0.0
    %936 = vmatpush1.msra.mxu0 0.0
    %937 = vmatprep.subr.mxu0 0.0
    %938 = vmatpush1.msra.mxu0 0.0
    %939 = vmatprep.subr.mxu0 0.0
    %940 = vmatpush1.msra.mxu0 0.0
    %941 = vmatprep.subr.mxu0 0.0
    %942 = vmatpush1.msra.mxu0 0.0
    %943 = vmatprep.subr.mxu0 0.0
    %944 = vmatpush1.msra.mxu0 0.0
    %945 = vmatprep.subr.mxu0 0.0
    %946 = vmatpush1.msra.mxu0 0.0
    %947 = vmatprep.subr.mxu0 0.0
    %948 = vmatpush1.msra.mxu0 0.0
    %949 = vmatprep.subr.mxu0 0.0
    %950 = vmatpush1.msra.mxu0 0.0
    %951 = vmatprep.subr.mxu0 0.0
    %952 = vmatpush1.msra.mxu0 0.0
    %953 = vmatprep.subr.mxu0 0.0
    %954 = vmatpush1.msra.mxu0 0.0
    %955 = vmatprep.subr.mxu0 0.0
    %956 = vmatpush1.msra.mxu0 0.0
    %957 = vmatprep.subr.mxu0 0.0
    %958 = vmatpush1.msra.mxu0 0.0
    %959 = vmatprep.subr.mxu0 0.0
    %960 = vmatpush1.msra.mxu0 0.0
    %961 = vmatprep.subr.mxu0 0.0
    %962 = vmatpush1.msra.mxu0 0.0
    %963 = vmatprep.subr.mxu0 0.0
    %964 = vmatpush1.msra.mxu0 0.0
    %965 = vmatprep.mubr.f32.mxu0 0.0
    %966 = vmatmul.mubr.f32.gmra.mrb[0].mxu0 %v884
    %v967 = vpop.f32.mrb[0].mxu0
    %v968 = vadd.f32 0.0, %v967
    %v969 = vpop.f32.mrb[0].mxu0
    %970 = vdwg.mxu0
    %971 = vst [vmem:[#allocation9] sm:$0x3] %v714
    %972 = vst [vmem:[#allocation10] sm:$0x3] %v968
    // Predicated region
    $region38: #{tpu_custom_call.1} parent=1 // pred_check
      _
    $region39: #{tpu_custom_call.1} parent=1 // pred_check_branch
      %974 = sbr.rel (0) target = $region41
    $region40: #{tpu_custom_call.1} parent=1 // pred_region
      %s976 = ssub.s32 32, 32
      %977 = vsyncadd [#allocation6], %s976
      %s979 = sshll.u32 [#allocation9], 4
      %s980 = int_to_ptr.vmem [resolvable:$true] %s979
      %982 = dma.vmem_to_hbm [thread:$0]  %s980, 32, %s7, [#allocation6]
    $region41: #{tpu_custom_call.1} parent=1 // pred_fallthru
      _
    // Predicated region
    $region42: #{tpu_custom_call.1} parent=1 // pred_check
      _
    $region43: #{tpu_custom_call.1} parent=1 // pred_check_branch
      %984 = sbr.rel (0) target = $region45
    $region44: #{tpu_custom_call.1} parent=1 // pred_region
      %s986 = ssub.s32 32, 32
      %987 = vsyncadd [#allocation11], %s986
      %s989 = sshll.u32 [#allocation10], 4
      %s990 = int_to_ptr.vmem [resolvable:$true] %s989
      %992 = dma.vmem_to_hbm [thread:$0]  %s990, 32, %s8, [#allocation11]
    $region45: #{tpu_custom_call.1} parent=1 // pred_fallthru
      _
    // Predicated region
    $region46: #{tpu_custom_call.1} parent=1 // pred_check
      _
    $region47: #{tpu_custom_call.1} parent=1 // pred_check_branch
      %994 = sbr.rel (0) target = $region49
    $region48: #{tpu_custom_call.1} parent=1 // pred_region
      %995 = dma.done [#allocation6], 32
    $region49: #{tpu_custom_call.1} parent=1 // pred_fallthru
      _
    // Predicated region
    $region50: #{tpu_custom_call.1} parent=1 // pred_check
      _
    $region51: #{tpu_custom_call.1} parent=1 // pred_check_branch
      %997 = sbr.rel (0) target = $region53
    $region52: #{tpu_custom_call.1} parent=1 // pred_region
      %998 = dma.done [#allocation11], 32
    $region53: #{tpu_custom_call.1} parent=1 // pred_fallthru
      _
    %999 = vsyncpa [#allocation5], 1
    %1000 = vsyncpa [#allocation8], 1
    %1001 = vsyncpa [#allocation6], 1
    %1002 = vsyncpa [#allocation11], 1

</llo_original>
